<compile_context>
chip_gen: v7x
topology: tpu7x:2x2x1
jax: 0.10.0
libtpu: 0.0.40
codegen_flags: <defaults>
</compile_context>

<pallas_src>
import jax
import jax.numpy as jnp
from jax.experimental import pallas as pl
from jax.experimental.pallas import tpu as pltpu

IN_DIM = 12          # obs_dim + act_dim
IN_PAD = 16          # padded feature count (sublane multiple)
HIDDEN = 64
OUT_PAD = 128        # lane-dense output width; column 0 holds the Q-value

# Row layout of the packed parameter slab (83, 64):
R_W1 = 0                       # rows [0, 16)   : padded W1   (16, 64)
R_W2 = IN_PAD                  # rows [16, 80)  : W2          (64, 64)
R_B1 = IN_PAD + HIDDEN         # row  80        : b1          (1, 64)
R_B2 = R_B1 + 1                # row  81        : b2          (1, 64)
R_W3 = R_B2 + 1                # row  82        : w3 (as row) (1, 64)
SLAB_ROWS = R_W3 + 1           # 83


def qnet_kernel(x_ref, w_ref, b3_ref, o_ref):
    x = x_ref[...]                                   # (TB, IN_PAD) f32
    w1 = w_ref[R_W1:R_W1 + IN_PAD, :]                # (16, 64)
    w2 = w_ref[R_W2:R_W2 + HIDDEN, :]                # (64, 64)
    b1 = w_ref[R_B1:R_B1 + 1, :]                     # (1, 64)
    b2 = w_ref[R_B2:R_B2 + 1, :]                     # (1, 64)
    w3 = w_ref[R_W3:R_W3 + 1, :]                     # (1, 64)

    h1 = jnp.maximum(jnp.dot(x, w1, preferred_element_type=jnp.float32) + b1, 0.0)
    h2 = jnp.maximum(jnp.dot(h1, w2, preferred_element_type=jnp.float32) + b2, 0.0)

    # Final 64 -> 1 layer: VPU multiply + lane reduce (an N=1 MXU matmul wastes
    # a full MXU pass for one output column).  b3 comes from SMEM.
    q = jnp.sum(h2 * w3, axis=-1, keepdims=True) + b3_ref[0]        # (TB, 1)

    # Lane-dense store: full-width (TB, 128) block; wrapper slices column 0.
    o_ref[...] = jnp.broadcast_to(q, (q.shape[0], OUT_PAD)).astype(o_ref.dtype)


def pack_params(w1, b1, w2, b2, w3, b3):
    """Pack all weights/biases into one (83, 64) f32 slab + a (1,) scalar b3."""
    w1p = jnp.zeros((IN_PAD, HIDDEN), jnp.float32).at[: w1.shape[0], :].set(
        w1.astype(jnp.float32))
    slab = jnp.concatenate(
        [
            w1p,                                        # (16, 64)
            w2.astype(jnp.float32),                     # (64, 64)
            b1.reshape(1, HIDDEN).astype(jnp.float32),  # (1, 64)
            b2.reshape(1, HIDDEN).astype(jnp.float32),  # (1, 64)
            w3.reshape(1, HIDDEN).astype(jnp.float32),  # (1, 64)  (w3 is (64, 1))
        ],
        axis=0,
    )
    b3s = jnp.asarray(b3, jnp.float32).reshape((1,))
    return slab, b3s


def qnetwork_forward(x, slab, b3s, *, max_tile=512):
    """x: (B, 12) -> (B, 1) Q-values."""
    B, F = x.shape
    assert F == IN_DIM and slab.shape == (SLAB_ROWS, HIDDEN)

    # Pad features 12 -> 16 (w1's padded rows are zero, result unchanged).
    x_p = jnp.zeros((B, IN_PAD), jnp.float32).at[:, :F].set(x.astype(jnp.float32))

    # Batch tile: multiple of 8 sublanes, capped so double-buffered x/out tiles
    # stay tiny relative to v7x's 64 MiB VMEM (TB=512 -> ~0.6 MiB total tiles).
    tb = min(max_tile, ((B + 7) // 8) * 8)
    bp = pl.cdiv(B, tb) * tb
    if bp != B:
        x_p = jnp.zeros((bp, IN_PAD), jnp.float32).at[:B, :].set(x_p)

    out = pl.pallas_call(
        qnet_kernel,
        out_shape=jax.ShapeDtypeStruct((bp, OUT_PAD), jnp.float32),
        grid=(bp // tb,),
        in_specs=[
            pl.BlockSpec((tb, IN_PAD), lambda i: (i, 0)),          # streamed x tile
            pl.BlockSpec((SLAB_ROWS, HIDDEN), lambda i: (0, 0)),   # resident weights
            pl.BlockSpec(memory_space=pltpu.MemorySpace.SMEM),     # scalar b3
        ],
        out_specs=pl.BlockSpec((tb, OUT_PAD), lambda i: (i, 0)),
        compiler_params=pltpu.CompilerParams(
            dimension_semantics=("parallel",),
        ),
    )(x_p, slab, b3s)

    return out[:B, :1]


def init_linear(key, fan_in, fan_out):
    # PyTorch nn.Linear default init: U(-1/sqrt(fan_in), 1/sqrt(fan_in)).
    kw, kb = jax.random.split(key)
    bound = 1.0 / jnp.sqrt(jnp.float32(fan_in))
    # stored as (in, out) so the kernel does x @ W (== x @ W_torch.T)
    w = jax.random.uniform(kw, (fan_in, fan_out), jnp.float32, -bound, bound)
    b = jax.random.uniform(kb, (1, fan_out), jnp.float32, -bound, bound)
    return w, b


def reference_forward(x, params):
    w1, b1, w2, b2, w3, b3 = params
    h1 = jnp.maximum(x @ w1 + b1, 0.0)
    h2 = jnp.maximum(h1 @ w2 + b2, 0.0)
    return h2 @ w3 + b3


if __name__ == "__main__":
    # env.observation_space.shape[1] = 8, env.action_space.shape[1] = 4
    obs_dim, act_dim, hidden, batch = 8, 4, 64, 8
    in_dim = obs_dim + act_dim

    key = jax.random.PRNGKey(0)
    kx, k1, k2, k3 = jax.random.split(key, 4)

    x = jax.random.normal(kx, (batch, in_dim), jnp.float32)
    w1, b1 = init_linear(k1, in_dim, hidden)
    w2, b2 = init_linear(k2, hidden, hidden)
    w3, b3 = init_linear(k3, hidden, 1)

    slab, b3s = pack_params(w1, b1, w2, b2, w3, b3)

    out = qnetwork_forward(x, slab, b3s)
    out = jax.block_until_ready(out)

    ref = reference_forward(x, (w1, b1, w2, b2, w3, b3))
    assert out.shape == (batch, 1)
    assert jnp.allclose(out, ref, atol=1e-5, rtol=1e-5), "mismatch vs reference"

    print("KERNEL_OK")
</pallas_src>

<mosaic_0001>
module attributes {stable_mosaic.version = 11 : i64} {
  func.func @qnet_kernel(%arg0: i32, %arg1: memref<8x16xf32, #tpu.memory_space<vmem>>, %arg2: memref<83x64xf32, #tpu.memory_space<vmem>>, %arg3: memref<1xf32, #tpu.memory_space<smem>>, %arg4: memref<8x128xf32, #tpu.memory_space<vmem>>) attributes {dimension_semantics = [#tpu.dimension_semantics<parallel>], iteration_bounds = array<i64: 1>, scalar_prefetch = 0 : i64, scratch_operands = 0 : i64, tpu.core_type = #tpu.core_type<tc>, window_params = [{transform_indices = @transform_0, window_bounds = array<i64: 8, 16>}, {pipeline_mode = #tpu.pipeline_mode<synchronous>, transform_indices = @transform_1, window_bounds = array<i64: 83, 64>}, {transform_indices = @transform_2, window_bounds = array<i64: 1>}, {transform_indices = @transform_3, window_bounds = array<i64: 8, 128>}]} {
    %c0 = arith.constant 0 : index
    %c0_0 = arith.constant 0 : index
    %0 = vector.load %arg1[%c0, %c0_0] : memref<8x16xf32, #tpu.memory_space<vmem>>, vector<8x16xf32>
    %c0_1 = arith.constant 0 : index
    %c0_2 = arith.constant 0 : index
    %1 = vector.load %arg2[%c0_1, %c0_2] : memref<83x64xf32, #tpu.memory_space<vmem>>, vector<16x64xf32>
    %c16 = arith.constant 16 : index
    %c0_3 = arith.constant 0 : index
    %2 = vector.load %arg2[%c16, %c0_3] : memref<83x64xf32, #tpu.memory_space<vmem>>, vector<64x64xf32>
    %c80 = arith.constant 80 : index
    %c0_4 = arith.constant 0 : index
    %3 = vector.load %arg2[%c80, %c0_4] : memref<83x64xf32, #tpu.memory_space<vmem>>, vector<1x64xf32>
    %c81 = arith.constant 81 : index
    %c0_5 = arith.constant 0 : index
    %4 = vector.load %arg2[%c81, %c0_5] : memref<83x64xf32, #tpu.memory_space<vmem>>, vector<1x64xf32>
    %c82 = arith.constant 82 : index
    %c0_6 = arith.constant 0 : index
    %5 = vector.load %arg2[%c82, %c0_6] : memref<83x64xf32, #tpu.memory_space<vmem>>, vector<1x64xf32>
    %cst = arith.constant dense<0.000000e+00> : vector<8x64xf32>
    %6 = tpu.matmul %0, %1, %cst {dimension_numbers = #tpu.dot_dimension_numbers<[1], [0], [0], [1], [0, 0, 1, 1], [], []>} : vector<8x16xf32>, vector<16x64xf32>, vector<8x64xf32> -> vector<8x64xf32>
    %7 = vector.broadcast %3 : vector<1x64xf32> to vector<8x64xf32>
    %8 = arith.addf %6, %7 : vector<8x64xf32>
    %cst_7 = arith.constant 0.000000e+00 : f32
    %9 = vector.broadcast %cst_7 : f32 to vector<8x64xf32>
    %10 = arith.maximumf %8, %9 : vector<8x64xf32>
    %cst_8 = arith.constant dense<0.000000e+00> : vector<8x64xf32>
    %11 = tpu.matmul %10, %2, %cst_8 {dimension_numbers = #tpu.dot_dimension_numbers<[1], [0], [0], [1], [0, 0, 1, 1], [], []>} : vector<8x64xf32>, vector<64x64xf32>, vector<8x64xf32> -> vector<8x64xf32>
    %12 = vector.broadcast %4 : vector<1x64xf32> to vector<8x64xf32>
    %13 = arith.addf %11, %12 : vector<8x64xf32>
    %cst_9 = arith.constant 0.000000e+00 : f32
    %14 = vector.broadcast %cst_9 : f32 to vector<8x64xf32>
    %15 = arith.maximumf %13, %14 : vector<8x64xf32>
    %16 = vector.broadcast %5 : vector<1x64xf32> to vector<8x64xf32>
    %17 = arith.mulf %15, %16 : vector<8x64xf32>
    %cst_10 = arith.constant dense<0.000000e+00> : vector<8xf32>
    %18 = vector.multi_reduction <add>, %17, %cst_10 [1] : vector<8x64xf32> to vector<8xf32>
    %19 = vector.shape_cast %18 : vector<8xf32> to vector<8x1xf32>
    %c0_11 = arith.constant 0 : index
    %20 = memref.load %arg3[%c0_11] : memref<1xf32, #tpu.memory_space<smem>>
    %21 = vector.broadcast %20 : f32 to vector<8x1xf32>
    %22 = arith.addf %19, %21 : vector<8x1xf32>
    %23 = vector.shape_cast %22 : vector<8x1xf32> to vector<8x1xf32>
    %24 = vector.broadcast %23 : vector<8x1xf32> to vector<8x128xf32>
    %c0_12 = arith.constant 0 : index
    %c0_13 = arith.constant 0 : index
    %25 = vector.load %arg4[%c0_12, %c0_13] : memref<8x128xf32, #tpu.memory_space<vmem>>, vector<8x128xf32>
    tpu.vector_store %arg4[%c0_12, %c0_13], %24 {strides = array<i32>} : memref<8x128xf32, #tpu.memory_space<vmem>>, vector<8x128xf32>,
    return
  }
  func.func @transform_0(%arg0: i32) -> (i32, i32) {
    %c0_i32 = arith.constant 0 : i32
    %c0_i32_0 = arith.constant 0 : i32
    return %arg0, %c0_i32 : i32, i32
  }
  func.func @transform_1(%arg0: i32) -> (i32, i32) {
    %c0_i32 = arith.constant 0 : i32
    %c0_i32_0 = arith.constant 0 : i32
    %c0_i32_1 = arith.constant 0 : i32
    return %c0_i32, %c0_i32_0 : i32, i32
  }
  func.func @transform_2(%arg0: i32) -> i32 {
    %c0_i32 = arith.constant 0 : i32
    %c0_i32_0 = arith.constant 0 : i32
    return %c0_i32 : i32
  }
  func.func @transform_3(%arg0: i32) -> (i32, i32) {
    %c0_i32 = arith.constant 0 : i32
    %c0_i32_0 = arith.constant 0 : i32
    return %arg0, %c0_i32 : i32, i32
  }
}

</mosaic_0001>

<llo_original>
// kernel: tpu_custom_call.1
$region0: #{tpu_custom_call.1}
  #allocation0 [shape = 'u32[]', space=smem, size = 0x4, offset = 0x4, fixed_abs, tag = 'smem constant byte address 0x4 - core index']
  #allocation1 [shape = 'u32[144,128]{1,0:T(1,128)}', space=vmem, size = 0x12000, scoped, tag = 'internal scratch']
  #allocation2 [shape = 'f32[1]{0:T(128)S(6)}', space=smem, size = 0x200, scoped, tag = 'scoped memory for tpu_custom_call.1']
  %s0 = inlined_call_operand.vmem [shape: f32[8,16], index: 0, kind: input, shape index: {}]
  %s1 = inlined_call_operand.vmem [shape: f32[83,64], index: 1, kind: input, shape index: {}]
  %s2 = inlined_call_operand.<no memory space> [shape: f32[1], index: 2, kind: input, shape index: {}]
  %s3 = inlined_call_operand.hbm [shape: f32[8,128], index: 3, kind: output, shape index: {}]
  %s4 = sld [smem:[#allocation0]]
  $region22: #{tpu_custom_call.1} parent=0
    _
  %s6 = ssub.s32 1, %s4
  %s7 = scalar_select 0, %s6, %s4
  %8 = sst [smem:[#allocation2]] %s2
  $region1: #{tpu_custom_call.1} parent=0
    #allocation3 [shape = 'u8[4096]{0}', space=vmem, size = 0x1000, scoped, tag = 'output window, operand 0, single buffered']
    #allocation4 [shape = 's32[1]{0}', space=sflag, size = 0x4, scoped, tag = 'scoped memory for tpu_custom_call.1']
    %9 = vsyncpa [#allocation4], 0
    // Predicated region
    $region2: #{tpu_custom_call.1} parent=1 // pred_check
      _
    $region3: #{tpu_custom_call.1} parent=1 // pred_check_branch
      %11 = sbr.rel (0) target = $region5
    $region4: #{tpu_custom_call.1} parent=1 // pred_region
      _
    $region5: #{tpu_custom_call.1} parent=1 // pred_fallthru
      _
    // Predicated region
    $region6: #{tpu_custom_call.1} parent=1 // pred_check
      _
    $region7: #{tpu_custom_call.1} parent=1 // pred_check_branch
      %13 = sbr.rel (0) target = $region9
    $region8: #{tpu_custom_call.1} parent=1 // pred_region
      _
    $region9: #{tpu_custom_call.1} parent=1 // pred_fallthru
      _
    // Predicated region
    $region10: #{tpu_custom_call.1} parent=1 // pred_check
      _
    $region11: #{tpu_custom_call.1} parent=1 // pred_check_branch
      %15 = sbr.rel (0) target = $region13
    $region12: #{tpu_custom_call.1} parent=1 // pred_region
      _
    $region13: #{tpu_custom_call.1} parent=1 // pred_fallthru
      _
    %v16 = vld [vmem:[%s0] sm:$0xff]
    %v17 = vld [vmem:[%s1] sm:$0xff]
    %v18 = vld [vmem:[%s1 + $0x8] sm:$0xff]
    %v19 = vld [vmem:[%s1 + $0x10] sm:$0xff]
    %v20 = vld [vmem:[%s1 + $0x18] sm:$0xff]
    %v21 = vld [vmem:[%s1 + $0x20] sm:$0xff]
    %v22 = vld [vmem:[%s1 + $0x28] sm:$0xff]
    %v23 = vld [vmem:[%s1 + $0x30] sm:$0xff]
    %v24 = vld [vmem:[%s1 + $0x38] sm:$0xff]
    %v25 = vld [vmem:[%s1 + $0x40] sm:$0xff]
    %v26 = vld [vmem:[%s1 + $0x48] sm:$0xff]
    %v27 = vld [vmem:[%s1 + $0x50] sm:$0x1]
    %v28 = vld [vmem:[%s1 + $0x51] sm:$0x1]
    %v29 = vld [vmem:[%s1 + $0x52] sm:$0x1]
    %v30 = vlaneseq
    %v31 = vshrl.u32 %v30, 7
    %v32 = vsub.s32 0, %v31
    %v33 = vrot.slane %v27, %v32
    %vm34 = vcmask 130048
    %v36 = vsel %vm34, %v16, 0
    %38 = vmatprep.subr.mxu0 0.0
    %39 = vmatpush1.msra.mxu0 %v17
    %40 = vmatprep.subr.mxu0 0.0
    %41 = vmatpush1.msra.mxu0 %v18
    %42 = vmatprep.subr.mxu0 0.0
    %43 = vmatpush1.msra.mxu0 0.0
    %44 = vmatprep.subr.mxu0 0.0
    %45 = vmatpush1.msra.mxu0 0.0
    %46 = vmatprep.subr.mxu0 0.0
    %47 = vmatpush1.msra.mxu0 0.0
    %48 = vmatprep.subr.mxu0 0.0
    %49 = vmatpush1.msra.mxu0 0.0
    %50 = vmatprep.subr.mxu0 0.0
    %51 = vmatpush1.msra.mxu0 0.0
    %52 = vmatprep.subr.mxu0 0.0
    %53 = vmatpush1.msra.mxu0 0.0
    %54 = vmatprep.subr.mxu0 0.0
    %55 = vmatpush1.msra.mxu0 0.0
    %56 = vmatprep.subr.mxu0 0.0
    %57 = vmatpush1.msra.mxu0 0.0
    %58 = vmatprep.subr.mxu0 0.0
    %59 = vmatpush1.msra.mxu0 0.0
    %60 = vmatprep.subr.mxu0 0.0
    %61 = vmatpush1.msra.mxu0 0.0
    %62 = vmatprep.subr.mxu0 0.0
    %63 = vmatpush1.msra.mxu0 0.0
    %64 = vmatprep.subr.mxu0 0.0
    %65 = vmatpush1.msra.mxu0 0.0
    %66 = vmatprep.subr.mxu0 0.0
    %67 = vmatpush1.msra.mxu0 0.0
    %68 = vmatprep.subr.mxu0 0.0
    %69 = vmatpush1.msra.mxu0 0.0
    %70 = vmatprep.subr.mxu0 0.0
    %71 = vmatpush1.msra.mxu0 0.0
    %72 = vmatprep.subr.mxu0 0.0
    %73 = vmatpush1.msra.mxu0 0.0
    %74 = vmatprep.subr.mxu0 0.0
    %75 = vmatpush1.msra.mxu0 0.0
    %76 = vmatprep.subr.mxu0 0.0
    %77 = vmatpush1.msra.mxu0 0.0
    %78 = vmatprep.subr.mxu0 0.0
    %79 = vmatpush1.msra.mxu0 0.0
    %80 = vmatprep.subr.mxu0 0.0
    %81 = vmatpush1.msra.mxu0 0.0
    %82 = vmatprep.subr.mxu0 0.0
    %83 = vmatpush1.msra.mxu0 0.0
    %84 = vmatprep.subr.mxu0 0.0
    %85 = vmatpush1.msra.mxu0 0.0
    %86 = vmatprep.subr.mxu0 0.0
    %87 = vmatpush1.msra.mxu0 0.0
    %88 = vmatprep.subr.mxu0 0.0
    %89 = vmatpush1.msra.mxu0 0.0
    %90 = vmatprep.subr.mxu0 0.0
    %91 = vmatpush1.msra.mxu0 0.0
    %92 = vmatprep.subr.mxu0 0.0
    %93 = vmatpush1.msra.mxu0 0.0
    %94 = vmatprep.subr.mxu0 0.0
    %95 = vmatpush1.msra.mxu0 0.0
    %96 = vmatprep.subr.mxu0 0.0
    %97 = vmatpush1.msra.mxu0 0.0
    %98 = vmatprep.subr.mxu0 0.0
    %99 = vmatpush1.msra.mxu0 0.0
    %100 = vmatprep.subr.mxu0 0.0
    %101 = vmatpush1.msra.mxu0 0.0
    %102 = vmatprep.mubr.f32.mxu0 0.0
    %103 = vmatmul.mubr.f32.gmra.mrb[0].mxu0 %v36
    %v104 = vpop.f32.mrb[0].mxu0
    %v105 = vadd.f32 %v33, %v104
    %v106 = vpop.f32.mrb[0].mxu0
    %107 = vdwg.mxu0
    %v108 = vmax.f32 %v105, 0.0
    %v109 = vlaneseq
    %v110 = vshrl.u32 %v109, 7
    %v111 = vsub.s32 0, %v110
    %v112 = vrot.slane %v28, %v111
    %vm113 = vcmask 523264
    %v115 = vsel %vm113, %v108, 0
    %117 = vmatprep.subr.mxu0 0.0
    %118 = vmatpush1.msra.mxu0 %v19
    %119 = vmatprep.subr.mxu0 0.0
    %120 = vmatpush1.msra.mxu0 %v20
    %121 = vmatprep.subr.mxu0 0.0
    %122 = vmatpush1.msra.mxu0 %v21
    %123 = vmatprep.subr.mxu0 0.0
    %124 = vmatpush1.msra.mxu0 %v22
    %125 = vmatprep.subr.mxu0 0.0
    %126 = vmatpush1.msra.mxu0 %v23
    %127 = vmatprep.subr.mxu0 0.0
    %128 = vmatpush1.msra.mxu0 %v24
    %129 = vmatprep.subr.mxu0 0.0
    %130 = vmatpush1.msra.mxu0 %v25
    %131 = vmatprep.subr.mxu0 0.0
    %132 = vmatpush1.msra.mxu0 %v26
    %133 = vmatprep.subr.mxu0 0.0
    %134 = vmatpush1.msra.mxu0 0.0
    %135 = vmatprep.subr.mxu0 0.0
    %136 = vmatpush1.msra.mxu0 0.0
    %137 = vmatprep.subr.mxu0 0.0
    %138 = vmatpush1.msra.mxu0 0.0
    %139 = vmatprep.subr.mxu0 0.0
    %140 = vmatpush1.msra.mxu0 0.0
    %141 = vmatprep.subr.mxu0 0.0
    %142 = vmatpush1.msra.mxu0 0.0
    %143 = vmatprep.subr.mxu0 0.0
    %144 = vmatpush1.msra.mxu0 0.0
    %145 = vmatprep.subr.mxu0 0.0
    %146 = vmatpush1.msra.mxu0 0.0
    %147 = vmatprep.subr.mxu0 0.0
    %148 = vmatpush1.msra.mxu0 0.0
    %149 = vmatprep.subr.mxu0 0.0
    %150 = vmatpush1.msra.mxu0 0.0
    %151 = vmatprep.subr.mxu0 0.0
    %152 = vmatpush1.msra.mxu0 0.0
    %153 = vmatprep.subr.mxu0 0.0
    %154 = vmatpush1.msra.mxu0 0.0
    %155 = vmatprep.subr.mxu0 0.0
    %156 = vmatpush1.msra.mxu0 0.0
    %157 = vmatprep.subr.mxu0 0.0
    %158 = vmatpush1.msra.mxu0 0.0
    %159 = vmatprep.subr.mxu0 0.0
    %160 = vmatpush1.msra.mxu0 0.0
    %161 = vmatprep.subr.mxu0 0.0
    %162 = vmatpush1.msra.mxu0 0.0
    %163 = vmatprep.subr.mxu0 0.0
    %164 = vmatpush1.msra.mxu0 0.0
    %165 = vmatprep.subr.mxu0 0.0
    %166 = vmatpush1.msra.mxu0 0.0
    %167 = vmatprep.subr.mxu0 0.0
    %168 = vmatpush1.msra.mxu0 0.0
    %169 = vmatprep.subr.mxu0 0.0
    %170 = vmatpush1.msra.mxu0 0.0
    %171 = vmatprep.subr.mxu0 0.0
    %172 = vmatpush1.msra.mxu0 0.0
    %173 = vmatprep.subr.mxu0 0.0
    %174 = vmatpush1.msra.mxu0 0.0
    %175 = vmatprep.subr.mxu0 0.0
    %176 = vmatpush1.msra.mxu0 0.0
    %177 = vmatprep.subr.mxu0 0.0
    %178 = vmatpush1.msra.mxu0 0.0
    %179 = vmatprep.subr.mxu0 0.0
    %180 = vmatpush1.msra.mxu0 0.0
    %181 = vmatprep.mubr.f32.mxu0 0.0
    %182 = vmatmul.mubr.f32.gmra.mrb[0].mxu0 %v115
    %v183 = vpop.f32.mrb[0].mxu0
    %v184 = vadd.f32 %v112, %v183
    %v185 = vpop.f32.mrb[0].mxu0
    %186 = vdwg.mxu0
    %v187 = vmax.f32 %v184, 0.0
    %v188 = vlaneseq
    %v189 = vshrl.u32 %v188, 7
    %v190 = vsub.s32 0, %v189
    %v191 = vrot.slane %v29, %v190
    %v192 = vmul.f32 %v187, %v191
    %v193 = vsel %vm113, %v192, 0.0
    %194 = vadd.xlane.f32.xlu0 %v193
    %v195 = vpop.xlane.xlu0 %194
    %s196 = sld [smem:[#allocation2]]
    %v197 = vstv %s196
    %v198 = vadd.f32 %v195, %v197
    %199 = vst [vmem:[#allocation3] sm:$0xff] %v198
    // Predicated region
    $region14: #{tpu_custom_call.1} parent=1 // pred_check
      _
    $region15: #{tpu_custom_call.1} parent=1 // pred_check_branch
      %201 = sbr.rel (0) target = $region17
    $region16: #{tpu_custom_call.1} parent=1 // pred_region
      %s203 = ssub.s32 128, 128
      %204 = vsyncadd [#allocation4], %s203
      %s206 = sshll.u32 [#allocation3], 4
      %s207 = int_to_ptr.vmem [resolvable:$true] %s206
      %209 = dma.vmem_to_hbm [thread:$0]  %s207, 128, %s3, [#allocation4]
    $region17: #{tpu_custom_call.1} parent=1 // pred_fallthru
      _
    // Predicated region
    $region18: #{tpu_custom_call.1} parent=1 // pred_check
      _
    $region19: #{tpu_custom_call.1} parent=1 // pred_check_branch
      %211 = sbr.rel (0) target = $region21
    $region20: #{tpu_custom_call.1} parent=1 // pred_region
      %212 = dma.done [#allocation4], 128
    $region21: #{tpu_custom_call.1} parent=1 // pred_fallthru
      _
    %213 = vsyncpa [#allocation4], 1

</llo_original>
